<compile_context>
chip_gen: v5e
topology: v5e:2x2
jax: 0.10.0
libtpu: 0.0.40
codegen_flags: <defaults>
</compile_context>

<pallas_src>
import jax
import jax.numpy as jnp
from jax.experimental import pallas as pl
from jax.experimental.pallas import tpu as pltpu

_LANE = 128


def _round_up(x, m):
    return (x + m - 1) // m * m


def _round_down(x, m):
    return x // m * m


def _scorer_kernel(x1_ref, x2_ref, w_ref, o_ref):
    # x1_ref: (TM, TN)   x2_ref: (TM, H)   w_ref: (H, TN)   o_ref: (1, TM) f32
    j = pl.program_id(1)

    @pl.when(j == 0)
    def _init():
        o_ref[...] = jnp.zeros_like(o_ref)

    # MXU matmul in native operand dtype (bf16 stays bf16), f32 accumulation.
    proj = jnp.dot(x2_ref[...], w_ref[...], preferred_element_type=jnp.float32)
    prod = x1_ref[...].astype(jnp.float32) * proj          # VPU, f32
    partial = jnp.sum(prod, axis=-1, keepdims=True)        # XLU lane-reduce, (TM, 1)
    o_ref[...] += partial.T                                 # lane-dense accumulate, (1, TM)

    @pl.when(j == pl.num_programs(1) - 1)
    def _finalize():
        o_ref[...] = jax.nn.sigmoid(o_ref[...])


def _vmem_limit_bytes():
    """Generation-aware scoped-VMEM limit (explicit, with headroom)."""
    cap = None
    try:
        info = pltpu.get_tpu_info()
        cap = getattr(info, "vmem_capacity_bytes", None)
    except Exception:
        cap = None
    if not cap:
        cap = 64 * 1024 * 1024  # conservative fallback (v7x per-TC size)
    # 3/4 of physical, capped at 100 MiB: raises v5e's 16 MiB scoped default,
    # uses most of v6e's 128 MiB, stays well inside v7x's 64 MiB per TC.
    return min((int(cap) * 3) // 4, 100 * 1024 * 1024)


def _pick_col_tile(H, w_itemsize, w_budget):
    """Weight column tile tn (divides H). tn == H unless the slab won't fit."""
    if 2 * H * H * w_itemsize <= w_budget or H % _LANE != 0:
        return H
    for k in range(H // _LANE, 0, -1):
        tn = k * _LANE
        if H % tn == 0 and 2 * H * tn * w_itemsize <= w_budget:
            return tn
    return _LANE


def _pick_row_tile(M, H, tn, x1_isz, x2_isz, w_isz, vmem_budget, block_rows):
    if M < _LANE:
        return M  # single block equal to the full (tiny) array

    w_block_bytes = 2 * H * tn * w_isz          # weight slab (assume double-buffered)
    per_row = (2 * H * x2_isz                   # x2 block, 2 pipeline buffers
               + 2 * tn * x1_isz                # x1 block, 2 pipeline buffers
               + 3 * tn * 4                     # in-kernel f32 temporaries (cast/proj/prod)
               + 2 * 4)                         # f32 output accumulator row (2 buffers)
    remaining = max(vmem_budget - w_block_bytes, per_row * _LANE)
    max_rows = max(_LANE, _round_down(remaining // per_row, _LANE))

    # ~2 MiB x2 block keeps the dominant HBM stream near the roofline.
    target_rows = max(_LANE, _round_down((2 << 20) // max(H * x2_isz, 1), _LANE))

    tm = min(target_rows, max_rows, _round_up(M, _LANE))
    # Keep >= 2 row tiles when possible so v7x can use both TensorCores.
    tm = min(tm, max(_LANE, _round_up((M + 1) // 2, _LANE)))
    if block_rows is not None:
        tm = min(tm, max(_LANE, _round_up(block_rows, _LANE)))
    # Prefer multiples of 256 (v6e/v7x MXU width) when the tile is large.
    if tm > 256 and tm % 256:
        tm = _round_down(tm, 256)
    return tm


def scorer_forward(input1, input2, weight, *, block_rows=None, compute_dtype=None):
    """sigmoid(sum(input1 * (input2 @ weight), axis=-1)).

    input1, input2: (..., H); weight: (H, H) -> output (...,).
    compute_dtype: optional dtype (e.g. jnp.bfloat16) applied once to the
    matmul operands (input2, weight) in the wrapper if accuracy allows.
    """
    assert input1.shape == input2.shape
    H = weight.shape[0]
    assert input1.shape[-1] == H and weight.shape == (H, H)

    out_dtype = jnp.result_type(input1.dtype, input2.dtype, weight.dtype)

    lead_shape = input1.shape[:-1]
    M = 1
    for d in lead_shape:
        M *= d

    x1 = input1.reshape(M, H)
    x2 = input2.reshape(M, H)
    w = weight
    if compute_dtype is not None:
        x2 = x2.astype(compute_dtype)
        w = w.astype(compute_dtype)

    vmem_limit = _vmem_limit_bytes()
    vmem_budget = vmem_limit * 4 // 5  # headroom for compiler scratch / descriptors

    tn = _pick_col_tile(H, w.dtype.itemsize, vmem_budget // 2)
    tm = _pick_row_tile(M, H, tn, x1.dtype.itemsize, x2.dtype.itemsize,
                        w.dtype.itemsize, vmem_budget, block_rows)

    num_row_tiles = (M + tm - 1) // tm   # ragged last block instead of jnp.pad
    num_col_tiles = H // tn              # tn always divides H

    cost = pl.CostEstimate(
        flops=2 * M * H * H + 2 * M * H,
        transcendentals=M,
        bytes_accessed=(x1.size * x1.dtype.itemsize
                        + x2.size * x2.dtype.itemsize
                        + w.size * w.dtype.itemsize
                        + M * 4),
    )

    out = pl.pallas_call(
        _scorer_kernel,
        out_shape=jax.ShapeDtypeStruct((num_row_tiles, tm), jnp.float32),
        grid=(num_row_tiles, num_col_tiles),
        in_specs=[
            pl.BlockSpec((tm, tn), lambda i, j: (i, j)),   # x1 (row x col tile)
            pl.BlockSpec((tm, H), lambda i, j: (i, 0)),    # x2 (full contraction dim)
            pl.BlockSpec((H, tn), lambda i, j: (0, j)),    # weight: VMEM-resident slab
        ],
        out_specs=pl.BlockSpec((1, tm), lambda i, j: (i, 0)),
        compiler_params=pltpu.CompilerParams(
            dimension_semantics=("parallel", "arbitrary"),
            vmem_limit_bytes=vmem_limit,
        ),
        cost_estimate=cost,
    )(x1, x2, w)

    # Rows >= M come from the ragged last block (don't-care values); slice off.
    return out.reshape(num_row_tiles * tm)[:M].reshape(lead_shape).astype(out_dtype)


def reference_forward(input1, input2, weight):
    return jax.nn.sigmoid(
        jnp.sum(input1 * jnp.matmul(input2, weight), axis=-1)
    )


if __name__ == "__main__":
    key = jax.random.PRNGKey(0)
    k1, k2, kw = jax.random.split(key, 3)

    B, S, H = 2, 8, 32  # small shapes consistent with the module
    input1 = jax.random.normal(k1, (B, S, H), dtype=jnp.float32)
    input2 = jax.random.normal(k2, (B, S, H), dtype=jnp.float32)
    # nn.Parameter(torch.Tensor(H, H)) is uninitialized in PyTorch; init
    # deterministically here.
    weight = jax.random.normal(kw, (H, H), dtype=jnp.float32) * 0.1

    out = scorer_forward(input1, input2, weight)
    jax.block_until_ready(out)
    ref = reference_forward(input1, input2, weight)
    assert out.shape == (B, S)
    assert jnp.allclose(out, ref, atol=1e-5, rtol=1e-5), "mismatch vs reference"

    # Multi-tile ragged path: grid > 1 row tiles, M not a multiple of tm,
    # no wrapper-side padding of the inputs.
    k3, k4 = jax.random.split(kw)
    in1b = jax.random.normal(k3, (3, 100, H), dtype=jnp.float32)
    in2b = jax.random.normal(k4, (3, 100, H), dtype=jnp.float32)
    out_b = scorer_forward(in1b, in2b, weight, block_rows=128)
    jax.block_until_ready(out_b)
    ref_b = reference_forward(in1b, in2b, weight)
    assert out_b.shape == (3, 100)
    assert jnp.allclose(out_b, ref_b, atol=1e-5, rtol=1e-5), "mismatch (tiled path)"

    # Optional reduced-precision matmul path (bf16 operands, f32 accumulate).
    out_c = scorer_forward(in1b, in2b, weight, block_rows=128,
                           compute_dtype=jnp.bfloat16)
    jax.block_until_ready(out_c)
    assert out_c.shape == (3, 100)
    assert bool(jnp.all(jnp.isfinite(out_c)))
    assert jnp.allclose(out_c, ref_b, atol=0.1), "mismatch (bf16 path)"

    print("KERNEL_OK")
</pallas_src>

<mosaic_0001>
module attributes {stable_mosaic.version = 11 : i64} {
  func.func @_scorer_kernel(%arg0: i32, %arg1: i32, %arg2: memref<16x32xf32, #tpu.memory_space<vmem>>, %arg3: memref<16x32xf32, #tpu.memory_space<vmem>>, %arg4: memref<32x32xf32, #tpu.memory_space<vmem>>, %arg5: memref<1x16xf32, #tpu.memory_space<vmem>>) attributes {dimension_semantics = [#tpu.dimension_semantics<parallel>, #tpu.dimension_semantics<arbitrary>], iteration_bounds = array<i64: 1, 1>, scalar_prefetch = 0 : i64, scratch_operands = 0 : i64, tpu.core_type = #tpu.core_type<tc>, window_params = [{transform_indices = @transform_0, window_bounds = array<i64: 16, 32>}, {transform_indices = @transform_1, window_bounds = array<i64: 16, 32>}, {transform_indices = @transform_2, window_bounds = array<i64: 32, 32>}, {transform_indices = @transform_3, window_bounds = array<i64: 1, 16>}]} {
    %c0_i32 = arith.constant 0 : i32
    %0 = arith.cmpi eq, %arg1, %c0_i32 : i32
    %1 = arith.extui %0 : i1 to i32
    %c0_i32_0 = arith.constant 0 : i32
    %2 = arith.cmpi ne, %1, %c0_i32_0 : i32
    scf.if %2 {
      %cst_13 = arith.constant 0.000000e+00 : f32
      %17 = vector.broadcast %cst_13 : f32 to vector<1x16xf32>
      %c0_14 = arith.constant 0 : index
      %c0_15 = arith.constant 0 : index
      %18 = vector.load %arg5[%c0_14, %c0_15] : memref<1x16xf32, #tpu.memory_space<vmem>>, vector<1x16xf32>
      tpu.vector_store %arg5[%c0_14, %c0_15], %17 {strides = array<i32>} : memref<1x16xf32, #tpu.memory_space<vmem>>, vector<1x16xf32>,
    } else {
    }
    %c0 = arith.constant 0 : index
    %c0_1 = arith.constant 0 : index
    %3 = vector.load %arg3[%c0, %c0_1] : memref<16x32xf32, #tpu.memory_space<vmem>>, vector<16x32xf32>
    %c0_2 = arith.constant 0 : index
    %c0_3 = arith.constant 0 : index
    %4 = vector.load %arg4[%c0_2, %c0_3] : memref<32x32xf32, #tpu.memory_space<vmem>>, vector<32x32xf32>
    %cst = arith.constant dense<0.000000e+00> : vector<16x32xf32>
    %5 = tpu.matmul %3, %4, %cst {dimension_numbers = #tpu.dot_dimension_numbers<[1], [0], [0], [1], [0, 0, 1, 1], [], []>} : vector<16x32xf32>, vector<32x32xf32>, vector<16x32xf32> -> vector<16x32xf32>
    %c0_4 = arith.constant 0 : index
    %c0_5 = arith.constant 0 : index
    %6 = vector.load %arg2[%c0_4, %c0_5] : memref<16x32xf32, #tpu.memory_space<vmem>>, vector<16x32xf32>
    %7 = arith.mulf %6, %5 : vector<16x32xf32>
    %cst_6 = arith.constant dense<0.000000e+00> : vector<16xf32>
    %8 = vector.multi_reduction <add>, %7, %cst_6 [1] : vector<16x32xf32> to vector<16xf32>
    %9 = vector.shape_cast %8 : vector<16xf32> to vector<16x1xf32>
    %c0_7 = arith.constant 0 : index
    %c0_8 = arith.constant 0 : index
    %10 = vector.load %arg5[%c0_7, %c0_8] : memref<1x16xf32, #tpu.memory_space<vmem>>, vector<1x16xf32>
    %11 = tpu.transpose %9, [1, 0] : vector<16x1xf32> -> vector<1x16xf32>
    %12 = arith.addf %10, %11 : vector<1x16xf32>
    %c0_9 = arith.constant 0 : index
    %c0_10 = arith.constant 0 : index
    %13 = vector.load %arg5[%c0_9, %c0_10] : memref<1x16xf32, #tpu.memory_space<vmem>>, vector<1x16xf32>
    tpu.vector_store %arg5[%c0_9, %c0_10], %12 {strides = array<i32>} : memref<1x16xf32, #tpu.memory_space<vmem>>, vector<1x16xf32>,
    %c0_i32_11 = arith.constant 0 : i32
    %14 = arith.cmpi eq, %arg1, %c0_i32_11 : i32
    %15 = arith.extui %14 : i1 to i32
    %c0_i32_12 = arith.constant 0 : i32
    %16 = arith.cmpi ne, %15, %c0_i32_12 : i32
    scf.if %16 {
      %c0_13 = arith.constant 0 : index
      %c0_14 = arith.constant 0 : index
      %17 = vector.load %arg5[%c0_13, %c0_14] : memref<1x16xf32, #tpu.memory_space<vmem>>, vector<1x16xf32>
      %18 = arith.negf %17 : vector<1x16xf32>
      %19 = math.exp %18 : vector<1x16xf32>
      %cst_15 = arith.constant 1.000000e+00 : f32
      %20 = vector.broadcast %cst_15 : f32 to vector<1x16xf32>
      %21 = arith.addf %20, %19 : vector<1x16xf32>
      %22 = arith.divf %20, %21 : vector<1x16xf32>
      %c0_16 = arith.constant 0 : index
      %c0_17 = arith.constant 0 : index
      %23 = vector.load %arg5[%c0_16, %c0_17] : memref<1x16xf32, #tpu.memory_space<vmem>>, vector<1x16xf32>
      tpu.vector_store %arg5[%c0_16, %c0_17], %22 {strides = array<i32>} : memref<1x16xf32, #tpu.memory_space<vmem>>, vector<1x16xf32>,
    } else {
    }
    return
  }
  func.func @transform_0(%arg0: i32, %arg1: i32) -> (i32, i32) {
    %c0_i32 = arith.constant 0 : i32
    return %arg0, %arg1 : i32, i32
  }
  func.func @transform_1(%arg0: i32, %arg1: i32) -> (i32, i32) {
    %c0_i32 = arith.constant 0 : i32
    %c0_i32_0 = arith.constant 0 : i32
    return %arg0, %c0_i32 : i32, i32
  }
  func.func @transform_2(%arg0: i32, %arg1: i32) -> (i32, i32) {
    %c0_i32 = arith.constant 0 : i32
    %c0_i32_0 = arith.constant 0 : i32
    return %c0_i32, %arg1 : i32, i32
  }
  func.func @transform_3(%arg0: i32, %arg1: i32) -> (i32, i32) {
    %c0_i32 = arith.constant 0 : i32
    %c0_i32_0 = arith.constant 0 : i32
    return %arg0, %c0_i32 : i32, i32
  }
}

</mosaic_0001>

<llo_original>
// kernel: tpu_custom_call.1
$region0: #{tpu_custom_call.1}
  #allocation0 [shape = 'u32[]', space=smem, size = 0x4, offset = 0x4, fixed_abs, tag = 'smem constant byte address 0x4 - core index']
  #allocation1 [shape = 'u32[72,128]{1,0:T(1,128)}', space=vmem, size = 0x9000, scoped, tag = 'internal scratch']
  %s0 = inlined_call_operand.hbm [shape: f32[16,32], index: 0, kind: input, shape index: {}]
  %s1 = inlined_call_operand.hbm [shape: f32[16,32], index: 1, kind: input, shape index: {}]
  %s2 = inlined_call_operand.hbm [shape: f32[32,32], index: 2, kind: input, shape index: {}]
  %s3 = inlined_call_operand.hbm [shape: f32[1,16], index: 3, kind: output, shape index: {}]
  %s4 = sld [smem:[#allocation0]]
  $region42: #{tpu_custom_call.1} parent=0
    _
  %s6 = ssub.s32 1, %s4
  %s7 = scalar_select 0, %s6, %s4
  $region1: #{tpu_custom_call.1} parent=0
    #allocation2 [shape = 'u8[8192]{0}', space=vmem, size = 0x2000, scoped, tag = 'input window, operand 0, single buffered']
    #allocation3 [shape = 's32[1]{0}', space=sflag, size = 0x4, scoped, tag = 'scoped memory for tpu_custom_call.1']
    #allocation4 [shape = 's32[1]{0}', space=sflag, size = 0x4, scoped, tag = 'scoped memory for tpu_custom_call.1']
    #allocation5 [shape = 'u8[8192]{0}', space=vmem, size = 0x2000, scoped, tag = 'input window, operand 1, single buffered']
    #allocation6 [shape = 's32[1]{0}', space=sflag, size = 0x4, scoped, tag = 'scoped memory for tpu_custom_call.1']
    #allocation7 [shape = 'u8[16384]{0}', space=vmem, size = 0x4000, scoped, tag = 'input window, operand 2, single buffered']
    #allocation8 [shape = 'u8[512]{0}', space=vmem, size = 0x400, scoped, tag = 'output window, operand 0, single buffered']
    %8 = vsyncpa [#allocation3], 0
    %9 = vsyncpa [#allocation6], 0
    %10 = vsyncpa [#allocation4], 0
    // Predicated region
    $region2: #{tpu_custom_call.1} parent=1 // pred_check
      _
    $region3: #{tpu_custom_call.1} parent=1 // pred_check_branch
      %12 = sbr.rel (0) target = $region5
    $region4: #{tpu_custom_call.1} parent=1 // pred_region
      %14 = vsyncadd [#allocation3], 0
      %s15 = sshll.u32 %s0, 4
      %s16 = int_to_ptr.hbm [resolvable:$true] %s15
      %s17 = sshll.u32 [#allocation2], 4
      %s18 = int_to_ptr.vmem [resolvable:$true] %s17
      %23 = dma.hbm_to_vmem [thread:$0]  %s16, 256, %s18, [#allocation3], 128, 128, 8
    $region5: #{tpu_custom_call.1} parent=1 // pred_fallthru
      _
    // Predicated region
    $region6: #{tpu_custom_call.1} parent=1 // pred_check
      _
    $region7: #{tpu_custom_call.1} parent=1 // pred_check_branch
      %25 = sbr.rel (0) target = $region9
    $region8: #{tpu_custom_call.1} parent=1 // pred_region
      %27 = vsyncadd [#allocation6], 0
      %s28 = sshll.u32 %s1, 4
      %s29 = int_to_ptr.hbm [resolvable:$true] %s28
      %s30 = sshll.u32 [#allocation5], 4
      %s31 = int_to_ptr.vmem [resolvable:$true] %s30
      %36 = dma.hbm_to_vmem [thread:$0]  %s29, 256, %s31, [#allocation6], 128, 128, 8
    $region9: #{tpu_custom_call.1} parent=1 // pred_fallthru
      _
    // Predicated region
    $region10: #{tpu_custom_call.1} parent=1 // pred_check
      _
    $region11: #{tpu_custom_call.1} parent=1 // pred_check_branch
      %38 = sbr.rel (0) target = $region13
    $region12: #{tpu_custom_call.1} parent=1 // pred_region
      %40 = vsyncadd [#allocation6], 0
      %s41 = sshll.u32 %s2, 4
      %s42 = int_to_ptr.hbm [resolvable:$true] %s41
      %s43 = sshll.u32 [#allocation7], 4
      %s44 = int_to_ptr.vmem [resolvable:$true] %s43
      %49 = dma.hbm_to_vmem [thread:$0]  %s42, 512, %s44, [#allocation6], 128, 128, 8
    $region13: #{tpu_custom_call.1} parent=1 // pred_fallthru
      _
    // Predicated region
    $region14: #{tpu_custom_call.1} parent=1 // pred_check
      _
    $region15: #{tpu_custom_call.1} parent=1 // pred_check_branch
      %51 = sbr.rel (0) target = $region17
    $region16: #{tpu_custom_call.1} parent=1 // pred_region
      %53 = dma.done [#allocation3], 256
    $region17: #{tpu_custom_call.1} parent=1 // pred_fallthru
      _
    // Predicated region
    $region18: #{tpu_custom_call.1} parent=1 // pred_check
      _
    $region19: #{tpu_custom_call.1} parent=1 // pred_check_branch
      %55 = sbr.rel (0) target = $region21
    $region20: #{tpu_custom_call.1} parent=1 // pred_region
      %57 = dma.done [#allocation6], 256
    $region21: #{tpu_custom_call.1} parent=1 // pred_fallthru
      _
    // Predicated region
    $region22: #{tpu_custom_call.1} parent=1 // pred_check
      _
    $region23: #{tpu_custom_call.1} parent=1 // pred_check_branch
      %59 = sbr.rel (0) target = $region25
    $region24: #{tpu_custom_call.1} parent=1 // pred_region
      %61 = dma.done [#allocation6], 512
    $region25: #{tpu_custom_call.1} parent=1 // pred_fallthru
      _
    %p62 = scmp.eq.s32.totalorder 0, 0
    // Predicated region
    $region26: #{tpu_custom_call.1} parent=1 // pred_check
      %p63 = pneg %p62
    $region27: #{tpu_custom_call.1} parent=1 // pred_check_branch
      %65 = sbr.rel (%p63) target = $region29
    $region28: #{tpu_custom_call.1} parent=1 // pred_region
      %vm66 = vcmask 122880
      %67 = vst.msk [vmem:[#allocation8] sm:$0x1] %vm66, 0.0
    $region29: #{tpu_custom_call.1} parent=1 // pred_fallthru
      _
    %v68 = vld [vmem:[#allocation5] sm:$0xff]
    %v69 = vld [vmem:[#allocation5 + $0x8] sm:$0xff]
    %v70 = vld [vmem:[#allocation7] sm:$0xff]
    %v71 = vld [vmem:[#allocation7 + $0x8] sm:$0xff]
    %v72 = vld [vmem:[#allocation7 + $0x10] sm:$0xff]
    %v73 = vld [vmem:[#allocation7 + $0x18] sm:$0xff]
    %vm74 = vcmask 261120
    %v76 = vsel %vm74, %v68, 0
    %v79 = vsel %vm74, %v69, 0
    %81 = vmatpush.msra.mxu0 0.0
    %82 = vmatpush.msra.mxu0 0.0
    %83 = vmatpush.msra.mxu0 0.0
    %84 = vmatpush.msra.mxu0 0.0
    %85 = vmatpush.msra.mxu0 0.0
    %86 = vmatpush.msra.mxu0 0.0
    %87 = vmatpush.msra.mxu0 0.0
    %88 = vmatpush.msra.mxu0 0.0
    %89 = vmatpush.msra.mxu0 0.0
    %90 = vmatpush.msra.mxu0 0.0
    %91 = vmatpush.msra.mxu0 0.0
    %92 = vmatpush.msra.mxu0 0.0
    %93 = vmatpush.msra.mxu0 %v73
    %94 = vmatpush.msra.mxu0 %v72
    %95 = vmatpush.msra.mxu0 %v71
    %96 = vmatpush.msra.mxu0 %v70
    %97 = vmatmul.f32.gmra.mxu0 %v76
    %v98 = vpop.f32.mrf.mxu0
    %v99 = vadd.f32 0.0, %v98
    %100 = vmatmul.f32.gmra.mxu0 %v79
    %v101 = vpop.f32.mrf.mxu0
    %v102 = vadd.f32 0.0, %v101
    %103 = vdwg.mxu0
    %v104 = vld [vmem:[#allocation2] sm:$0xff]
    %v105 = vld [vmem:[#allocation2 + $0x8] sm:$0xff]
    %v106 = vmul.f32 %v104, %v99
    %v107 = vmul.f32 %v105, %v102
    %v108 = vsel %vm74, %v106, 0.0
    %109 = vadd.xlane.f32.xlu0 %v108
    %v110 = vpop.xlane.xlu0 %109
    %v111 = vsel %vm74, %v107, 0.0
    %112 = vadd.xlane.f32.xlu0 %v111
    %v113 = vpop.xlane.xlu0 %112
    %v114 = vld [vmem:[#allocation8] sm:$0x1]
    %115 = vxpose.xlu0.b32.start [1/16] %v110, 128
    %116 = vxpose.xlu0.b32.cont [2/16] %v113, 128
    %117 = vxpose.xlu0.b32.cont [3/16] 0.0, 128
    %118 = vxpose.xlu0.b32.cont [4/16] 0.0, 128
    %119 = vxpose.xlu0.b32.cont [5/16] 0.0, 128
    %120 = vxpose.xlu0.b32.cont [6/16] 0.0, 128
    %121 = vxpose.xlu0.b32.cont [7/16] 0.0, 128
    %122 = vxpose.xlu0.b32.cont [8/16] 0.0, 128
    %123 = vxpose.xlu0.b32.cont [9/16] 0.0, 128
    %124 = vxpose.xlu0.b32.cont [10/16] 0.0, 128
    %125 = vxpose.xlu0.b32.cont [11/16] 0.0, 128
    %126 = vxpose.xlu0.b32.cont [12/16] 0.0, 128
    %127 = vxpose.xlu0.b32.cont [13/16] 0.0, 128
    %128 = vxpose.xlu0.b32.cont [14/16] 0.0, 128
    %129 = vxpose.xlu0.b32.cont [15/16] 0.0, 128
    %130 = vxpose.xlu0.b32.end [16/16] 0.0, 128
    %v131 = vpop.trf.xlu0
    %v132 = vpop.trf.xlu0
    %v133 = vpop.trf.xlu0
    %v134 = vpop.trf.xlu0
    %v135 = vpop.trf.xlu0
    %v136 = vpop.trf.xlu0
    %v137 = vpop.trf.xlu0
    %v138 = vpop.trf.xlu0
    %v139 = vpop.trf.xlu0
    %v140 = vpop.trf.xlu0
    %v141 = vpop.trf.xlu0
    %v142 = vpop.trf.xlu0
    %v143 = vpop.trf.xlu0
    %v144 = vpop.trf.xlu0
    %v145 = vpop.trf.xlu0
    %v146 = vpop.trf.xlu0
    %v147 = vadd.f32 %v114, %v131
    %vm148 = vcmask 122880
    %149 = vst.msk [vmem:[#allocation8] sm:$0x1] %vm148, %v147
    // Predicated region
    $region30: #{tpu_custom_call.1} parent=1 // pred_check
      %p150 = pneg %p62
    $region31: #{tpu_custom_call.1} parent=1 // pred_check_branch
      %152 = sbr.rel (%p150) target = $region33
    $region32: #{tpu_custom_call.1} parent=1 // pred_region
      %v153 = vld [vmem:[#allocation8] sm:$0x1]
      %v154 = vxor.u32 %v153, 2147483648
      %v155 = vmul.f32 %v154, 1.442695
      %v156 = vpow.pop %v155
      %v157 = vadd.f32 %v156, 1.0
      %v158 = vrcp.pop %v157
      %v159 = vmul.f32 %v157, %v158
      %v160 = vsub.f32 1.0, %v159
      %v161 = vmul.f32 %v158, %v160
      %v162 = vadd.f32 %v158, %v161
      %vm163 = vweird.f32 %v157
      %vm164 = vweird.f32 %v158
      %vm165 = vmor %vm163, %vm164
      %v166 = vsel %vm165, %v158, %v162
      %v167 = vand.u32 2147483647, %v157
      %vm168 = vcmp.eq.f32.partialorder %v167, 8.507059e+37
      %v169 = vand.u32 %v157, 2147483648
      %v170 = vor.u32 1.1754944e-38, %v169
      %v171 = vsel %vm168, %v170, %v166
      %v172 = vmul.f32 1.0, %v171
      %173 = vst.msk [vmem:[#allocation8] sm:$0x1] %vm148, %v172
    $region33: #{tpu_custom_call.1} parent=1 // pred_fallthru
      _
    // Predicated region
    $region34: #{tpu_custom_call.1} parent=1 // pred_check
      _
    $region35: #{tpu_custom_call.1} parent=1 // pred_check_branch
      %175 = sbr.rel (0) target = $region37
    $region36: #{tpu_custom_call.1} parent=1 // pred_region
      %177 = vsyncadd [#allocation4], 0
      %s179 = sshll.u32 [#allocation8], 4
      %s180 = int_to_ptr.vmem [resolvable:$true] %s179
      %s181 = sshll.u32 %s3, 4
      %s182 = int_to_ptr.hbm [resolvable:$true] %s181
      %184 = dma.vmem_to_hbm [thread:$0]  %s180, 16, %s182, [#allocation4]
    $region37: #{tpu_custom_call.1} parent=1 // pred_fallthru
      _
    // Predicated region
    $region38: #{tpu_custom_call.1} parent=1 // pred_check
      _
    $region39: #{tpu_custom_call.1} parent=1 // pred_check_branch
      %186 = sbr.rel (0) target = $region41
    $region40: #{tpu_custom_call.1} parent=1 // pred_region
      %188 = dma.done [#allocation4], 16
    $region41: #{tpu_custom_call.1} parent=1 // pred_fallthru
      _
    %189 = vsyncpa [#allocation3], 1
    %190 = vsyncpa [#allocation6], 1
    %191 = vsyncpa [#allocation4], 1

</llo_original>
